<compile_context>
chip_gen: v5e
topology: v5e:2x2
jax: 0.10.0
libtpu: 0.0.40
codegen_flags: <defaults>
</compile_context>

<pallas_src>
import functools

import jax
import jax.numpy as jnp
from jax.experimental import pallas as pl
from jax.experimental.pallas import tpu as pltpu

EPS = 1e-5

_TARGET_TILE_BYTES = 4 * 1024 * 1024   # aim for a 2-8 MiB input tile per step


def _round_up(n, m):
    return (n + m - 1) // m * m


@functools.lru_cache(maxsize=1)
def _vmem_budget():
    """Return (tile-data budget, scoped vmem limit) in bytes, per generation."""
    try:
        cap = int(pltpu.get_tpu_info().vmem_capacity_bytes)
    except Exception:
        cap = 64 * 1024 * 1024          # conservative default (v7x per-TC VMEM)
    limit = min(int(cap * 0.75), 100 * 1024 * 1024)   # v6e/v5e ~96 MiB, v7x ~48 MiB
    budget = int(cap * 0.5)                            # data (tiles + temps) budget
    return budget, limit


def _layernorm_kernel(x_ref, scale_ref, shift_ref, o_ref, *, eps):
    # x_ref: (TM, D)   scale_ref/shift_ref: (1, D) f32   o_ref: (TM, D)
    x = x_ref[...].astype(jnp.float32)
    # Two-pass statistics (PyTorch var(unbiased=False) semantics) — avoids the
    # catastrophic cancellation of the E[x^2] - E[x]^2 one-pass form.
    mean = jnp.mean(x, axis=-1, keepdims=True)
    centered = x - mean
    var = jnp.mean(centered * centered, axis=-1, keepdims=True)
    norm = centered * jax.lax.rsqrt(var + eps)          # rsqrt -> EUP (free slot)
    o_ref[...] = (scale_ref[...] * norm + shift_ref[...]).astype(o_ref.dtype)


def _pick_tile_rows(rows, d, itemsize):
    """Choose the row-tile size tm (multiple of the sublane count)."""
    sub = 8 if itemsize >= 4 else (16 if itemsize == 2 else 32)
    budget, _ = _vmem_budget()

    # VMEM accounting per tile row:
    #   double-buffered in + out tiles            : 2 * 2 * D * itemsize
    #   ~3 f32 in-kernel temps (x, centered, norm): 3 * D * 4
    bytes_per_row = d * (4 * itemsize + 3 * 4)
    max_tm = max(sub, (budget // bytes_per_row) // sub * sub)

    # Target a multi-MiB *input* tile (small tiles lose HBM roofline to the
    # ~0.35 us fixed per-grid-step overhead).
    tgt_tm = max(sub, (_TARGET_TILE_BYTES // (d * itemsize)) // sub * sub)

    tm = min(tgt_tm, max_tm, _round_up(rows, sub))

    # Keep >= 2 grid steps when rows allow so the "parallel" row axis can be
    # sharded across both TensorCores on v7x.
    if rows > sub and -(-rows // tm) < 2:
        tm = max(sub, _round_up(-(-rows // 2), sub))
    return tm


@functools.partial(jax.jit, static_argnames=("tm", "vmem_limit"))
def _layernorm_call(x, scale, shift, *, tm, vmem_limit):
    orig_shape = x.shape
    d = orig_shape[-1]
    rows = 1
    for s in orig_shape[:-1]:
        rows *= s

    x2 = x.reshape(rows, d)
    # Pre-cast params to f32 once in the wrapper (not per grid step).
    scale2 = scale.astype(jnp.float32).reshape(1, d)
    shift2 = shift.astype(jnp.float32).reshape(1, d)

    kernel = functools.partial(_layernorm_kernel, eps=float(EPS))

    out = pl.pallas_call(
        kernel,
        out_shape=jax.ShapeDtypeStruct((rows, d), x.dtype),
        grid_spec=pltpu.PrefetchScalarGridSpec(
            num_scalar_prefetch=0,
            grid=(pl.cdiv(rows, tm),),           # ragged final block is masked
            in_specs=[
                pl.BlockSpec((tm, d), lambda i: (i, 0)),   # x tile (full D lanes)
                pl.BlockSpec((1, d), lambda i: (0, 0)),    # scale (broadcast)
                pl.BlockSpec((1, d), lambda i: (0, 0)),    # shift (broadcast)
            ],
            out_specs=pl.BlockSpec((tm, d), lambda i: (i, 0)),
        ),
        compiler_params=pltpu.CompilerParams(
            dimension_semantics=("parallel",),
            vmem_limit_bytes=vmem_limit,
        ),
    )(x2, scale2, shift2)

    return out.reshape(orig_shape)


def layernorm(x, scale, shift):
    """LayerNorm over the last dimension of x (PyTorch LayerNorm semantics).

    x: (..., D);  scale, shift: (D,)
    """
    d = x.shape[-1]
    rows = 1
    for s in x.shape[:-1]:
        rows *= s
    tm = _pick_tile_rows(rows, d, jnp.dtype(x.dtype).itemsize)
    _, vmem_limit = _vmem_budget()
    return _layernorm_call(x, scale, shift, tm=tm, vmem_limit=vmem_limit)


if __name__ == "__main__":
    # Small shapes consistent with the module: batch=2, seq=8, emb_dim=32
    B, S, D = 2, 8, 32
    key = jax.random.PRNGKey(0)
    x = jax.random.normal(key, (B, S, D), dtype=jnp.float32)

    # Parameters mirroring nn.Parameter(torch.ones/zeros(emb_dim))
    scale = jnp.ones((D,), dtype=jnp.float32)
    shift = jnp.zeros((D,), dtype=jnp.float32)

    y = layernorm(x, scale, shift)
    jax.block_until_ready(y)

    # Reference check against plain JAX (same semantics as the PyTorch module)
    mean = jnp.mean(x, axis=-1, keepdims=True)
    var = jnp.mean((x - mean) ** 2, axis=-1, keepdims=True)
    ref = scale * ((x - mean) / jnp.sqrt(var + EPS)) + shift
    assert jnp.allclose(y, ref, atol=2e-5, rtol=1e-5), "mismatch vs reference"

    print("KERNEL_OK")
</pallas_src>

<mosaic_0001>
module attributes {stable_mosaic.version = 11 : i64} {
  func.func @_layernorm_kernel(%arg0: i32, %arg1: memref<8x32xf32, #tpu.memory_space<vmem>>, %arg2: memref<1x32xf32, #tpu.memory_space<vmem>>, %arg3: memref<1x32xf32, #tpu.memory_space<vmem>>, %arg4: memref<8x32xf32, #tpu.memory_space<vmem>>) attributes {dimension_semantics = [#tpu.dimension_semantics<parallel>], iteration_bounds = array<i64: 2>, scalar_prefetch = 0 : i64, scratch_operands = 0 : i64, tpu.core_type = #tpu.core_type<tc>, window_params = [{transform_indices = @transform_0, window_bounds = array<i64: 8, 32>}, {pipeline_mode = #tpu.pipeline_mode<synchronous>, transform_indices = @transform_1, window_bounds = array<i64: 1, 32>}, {pipeline_mode = #tpu.pipeline_mode<synchronous>, transform_indices = @transform_2, window_bounds = array<i64: 1, 32>}, {transform_indices = @transform_3, window_bounds = array<i64: 8, 32>}]} {
    %c0 = arith.constant 0 : index
    %c0_0 = arith.constant 0 : index
    %0 = vector.load %arg1[%c0, %c0_0] : memref<8x32xf32, #tpu.memory_space<vmem>>, vector<8x32xf32>
    %cst = arith.constant dense<0.000000e+00> : vector<8xf32>
    %1 = vector.multi_reduction <add>, %0, %cst [1] : vector<8x32xf32> to vector<8xf32>
    %2 = vector.shape_cast %1 : vector<8xf32> to vector<8x1xf32>
    %cst_1 = arith.constant 3.200000e+01 : f32
    %3 = vector.broadcast %cst_1 : f32 to vector<8x1xf32>
    %4 = arith.divf %2, %3 : vector<8x1xf32>
    %5 = vector.broadcast %4 : vector<8x1xf32> to vector<8x32xf32>
    %6 = arith.subf %0, %5 : vector<8x32xf32>
    %7 = arith.mulf %6, %6 : vector<8x32xf32>
    %cst_2 = arith.constant dense<0.000000e+00> : vector<8xf32>
    %8 = vector.multi_reduction <add>, %7, %cst_2 [1] : vector<8x32xf32> to vector<8xf32>
    %9 = vector.shape_cast %8 : vector<8xf32> to vector<8x1xf32>
    %cst_3 = arith.constant 3.200000e+01 : f32
    %10 = vector.broadcast %cst_3 : f32 to vector<8x1xf32>
    %11 = arith.divf %9, %10 : vector<8x1xf32>
    %cst_4 = arith.constant 9.99999974E-6 : f32
    %12 = vector.broadcast %cst_4 : f32 to vector<8x1xf32>
    %13 = arith.addf %11, %12 : vector<8x1xf32>
    %14 = math.rsqrt %13 : vector<8x1xf32>
    %15 = vector.broadcast %14 : vector<8x1xf32> to vector<8x32xf32>
    %16 = arith.mulf %6, %15 : vector<8x32xf32>
    %c0_5 = arith.constant 0 : index
    %c0_6 = arith.constant 0 : index
    %17 = vector.load %arg2[%c0_5, %c0_6] : memref<1x32xf32, #tpu.memory_space<vmem>>, vector<1x32xf32>
    %18 = vector.broadcast %17 : vector<1x32xf32> to vector<8x32xf32>
    %19 = arith.mulf %18, %16 : vector<8x32xf32>
    %c0_7 = arith.constant 0 : index
    %c0_8 = arith.constant 0 : index
    %20 = vector.load %arg3[%c0_7, %c0_8] : memref<1x32xf32, #tpu.memory_space<vmem>>, vector<1x32xf32>
    %21 = vector.broadcast %20 : vector<1x32xf32> to vector<8x32xf32>
    %22 = arith.addf %19, %21 : vector<8x32xf32>
    %c0_9 = arith.constant 0 : index
    %c0_10 = arith.constant 0 : index
    %23 = vector.load %arg4[%c0_9, %c0_10] : memref<8x32xf32, #tpu.memory_space<vmem>>, vector<8x32xf32>
    tpu.vector_store %arg4[%c0_9, %c0_10], %22 {strides = array<i32>} : memref<8x32xf32, #tpu.memory_space<vmem>>, vector<8x32xf32>,
    return
  }
  func.func @transform_0(%arg0: i32) -> (i32, i32) {
    %c0_i32 = arith.constant 0 : i32
    %c0_i32_0 = arith.constant 0 : i32
    return %arg0, %c0_i32 : i32, i32
  }
  func.func @transform_1(%arg0: i32) -> (i32, i32) {
    %c0_i32 = arith.constant 0 : i32
    %c0_i32_0 = arith.constant 0 : i32
    %c0_i32_1 = arith.constant 0 : i32
    return %c0_i32, %c0_i32_0 : i32, i32
  }
  func.func @transform_2(%arg0: i32) -> (i32, i32) {
    %c0_i32 = arith.constant 0 : i32
    %c0_i32_0 = arith.constant 0 : i32
    %c0_i32_1 = arith.constant 0 : i32
    return %c0_i32, %c0_i32_0 : i32, i32
  }
  func.func @transform_3(%arg0: i32) -> (i32, i32) {
    %c0_i32 = arith.constant 0 : i32
    %c0_i32_0 = arith.constant 0 : i32
    return %arg0, %c0_i32 : i32, i32
  }
}

</mosaic_0001>

<llo_original>
// kernel: _layernorm_call.1
$region0: #{_layernorm_call.1}
  #allocation0 [shape = 'u32[]', space=smem, size = 0x4, offset = 0x4, fixed_abs, tag = 'smem constant byte address 0x4 - core index']
  #allocation1 [shape = 'u32[72,128]{1,0:T(1,128)}', space=vmem, size = 0x9000, scoped, tag = 'internal scratch']
  %s0 = inlined_call_operand.hbm [shape: f32[16,32], index: 0, kind: input, shape index: {}]
  %s1 = inlined_call_operand.vmem [shape: f32[1,32], index: 1, kind: input, shape index: {}]
  %s2 = inlined_call_operand.vmem [shape: f32[1,32], index: 2, kind: input, shape index: {}]
  %s3 = inlined_call_operand.hbm [shape: f32[16,32], index: 3, kind: output, shape index: {}]
  %s4 = sld [smem:[#allocation0]]
  $region49: #{_layernorm_call.1} parent=0
    _
  %s6 = ssub.s32 1, %s4
  %s7 = scalar_select 0, %s6, %s4
  $region1: #{_layernorm_call.1} parent=0
    #allocation2 [shape = 'u8[8192]{0}', space=vmem, size = 0x2000, scoped, tag = 'input window, operand 0']
    #allocation3 [shape = 's32[2]{0}', space=sflag, size = 0x8, scoped, tag = 'scoped memory for _layernorm_call.1']
    #allocation4 [shape = 's32[2]{0}', space=sflag, size = 0x8, scoped, tag = 'scoped memory for _layernorm_call.1']
    #allocation5 [shape = 'u8[8192]{0}', space=vmem, size = 0x2000, scoped, tag = 'output window, operand 0']
    %8 = vsyncpa [#allocation3], 0
    %s9 = scalar_lea.sflag [#allocation3], 1
    %10 = vsyncpa %s9, 0
    %11 = vsyncpa [#allocation4], 0
    %s12 = scalar_lea.sflag [#allocation4], 1
    %13 = vsyncpa %s12, 0
    loop: start=0, step=1, limit=4
    $region2: #{_layernorm_call.1} parent=1 // loop_pre_header
      _
    $region3: #{_layernorm_call.1} parent=1 // loop_header
      %s15 = sphi 0, %s19
      %p16 = scmp.ge.s32.totalorder %s15, 4
      %s25 = sphi 0, %s27
      %s28 = sphi 0, %s25
      %s29 = sphi 0, %s28
      %s45 = sphi 0, %s29
      %s49 = sphi 0, %s49
      %s51 = sphi 0, %s49
      %s52 = sphi 0, %s51
      %s66 = sphi 0, %s52
      %s70 = sphi 0, %s70
      %s72 = sphi 0, %s70
      %s73 = sphi 0, %s72
      %s87 = sphi 0, %s73
      %s93 = sphi 0, %s95
      %s96 = sphi 0, %s93
      %s97 = sphi 0, %s96
      %s113 = sphi 0, %s97
    $region4: #{_layernorm_call.1} parent=1 // loop_header_branch
      %18 = sbr.rel (%p16) target = $region8
    $region5: #{_layernorm_call.1} parent=1 // loop_body
      %s20 = ssub.s32 %s15, 1
      %s21 = ssub.s32 %s15, 2
      %s22 = sadd.s32 %s15, 1
      %s23 = ssub.s32 %s15, %s22
      %p24 = scmp.eq.s32.totalorder %s23, 0
      %s26 = sadd.s32 %s25, 1
      %s27 = scalar_select %p24, %s25, %s26
      %p30 = pneg %p24
      %p31 = scmp.eq.s32.totalorder %s15, 1
      %p32 = por %p30, %p31
      %p33 = scmp.ne.s32.totalorder %s25, %s28
      %p34 = scmp.eq.s32.totalorder %s15, 0
      %p35 = por %p33, %p34
      %p36 = scmp.ne.s32.totalorder %s25, %s28
      %p37 = scmp.eq.s32.totalorder %s20, 1
      %p38 = por %p36, %p37
      %p39 = scmp.ne.s32.totalorder %s28, %s29
      %p40 = scmp.eq.s32.totalorder %s20, 0
      %p41 = por %p39, %p40
      %p42 = scmp.ne.s32.totalorder %s28, %s29
      %p43 = scmp.eq.s32.totalorder %s21, 1
      %p44 = por %p42, %p43
      %p46 = scmp.ne.s32.totalorder %s29, %s45
      %p47 = scmp.eq.s32.totalorder %s21, 0
      %p48 = por %p46, %p47
      %s50 = sadd.s32 %s49, 1
      %p53 = scmp.eq.s32.totalorder %s15, 1
      %p54 = scmp.ne.s32.totalorder %s49, %s51
      %p55 = scmp.eq.s32.totalorder %s15, 0
      %p56 = por %p54, %p55
      %p57 = scmp.ne.s32.totalorder %s49, %s51
      %p58 = scmp.eq.s32.totalorder %s20, 1
      %p59 = por %p57, %p58
      %p60 = scmp.ne.s32.totalorder %s51, %s52
      %p61 = scmp.eq.s32.totalorder %s20, 0
      %p62 = por %p60, %p61
      %p63 = scmp.ne.s32.totalorder %s51, %s52
      %p64 = scmp.eq.s32.totalorder %s21, 1
      %p65 = por %p63, %p64
      %p67 = scmp.ne.s32.totalorder %s52, %s66
      %p68 = scmp.eq.s32.totalorder %s21, 0
      %p69 = por %p67, %p68
      %s71 = sadd.s32 %s70, 1
      %p74 = scmp.eq.s32.totalorder %s15, 1
      %p75 = scmp.ne.s32.totalorder %s70, %s72
      %p76 = scmp.eq.s32.totalorder %s15, 0
      %p77 = por %p75, %p76
      %p78 = scmp.ne.s32.totalorder %s70, %s72
      %p79 = scmp.eq.s32.totalorder %s20, 1
      %p80 = por %p78, %p79
      %p81 = scmp.ne.s32.totalorder %s72, %s73
      %p82 = scmp.eq.s32.totalorder %s20, 0
      %p83 = por %p81, %p82
      %p84 = scmp.ne.s32.totalorder %s72, %s73
      %p85 = scmp.eq.s32.totalorder %s21, 1
      %p86 = por %p84, %p85
      %p88 = scmp.ne.s32.totalorder %s73, %s87
      %p89 = scmp.eq.s32.totalorder %s21, 0
      %p90 = por %p88, %p89
      %s91 = ssub.s32 %s15, %s22
      %p92 = scmp.eq.s32.totalorder %s91, 0
      %s94 = sadd.s32 %s93, 1
      %s95 = scalar_select %p92, %s93, %s94
      %p98 = pneg %p92
      %p99 = scmp.eq.s32.totalorder %s15, 1
      %p100 = por %p98, %p99
      %p101 = scmp.ne.s32.totalorder %s93, %s96
      %p102 = scmp.eq.s32.totalorder %s15, 0
      %p103 = por %p101, %p102
      %p104 = scmp.ne.s32.totalorder %s93, %s96
      %p105 = scmp.eq.s32.totalorder %s20, 1
      %p106 = por %p104, %p105
      %p107 = scmp.ne.s32.totalorder %s96, %s97
      %p108 = scmp.eq.s32.totalorder %s20, 0
      %p109 = por %p107, %p108
      %p110 = scmp.ne.s32.totalorder %s96, %s97
      %p111 = scmp.eq.s32.totalorder %s21, 1
      %p112 = por %p110, %p111
      %p114 = scmp.ne.s32.totalorder %s97, %s113
      %p115 = scmp.eq.s32.totalorder %s21, 0
      %p116 = por %p114, %p115
      %p117 = scmp.le.s32.totalorder 1, %s15
      %p118 = scmp.lt.s32.totalorder %s15, 3
      %p119 = pnand %p117, %p118
      %p120 = pneg %p119
      // Predicated region
      $region9: #{_layernorm_call.1} parent=5 // pred_check
        _
      $region10: #{_layernorm_call.1} parent=5 // pred_check_branch
        %122 = sbr.rel (%p119) target = $region12
      $region11: #{_layernorm_call.1} parent=5 // pred_region
        %s123 = ssub.s32 %s15, 1
        // Predicated region
        $region13: #{_layernorm_call.1} parent=11 // pred_check
          %p124 = pneg %p62
        $region14: #{_layernorm_call.1} parent=11 // pred_check_branch
          %126 = sbr.rel (%p124) target = $region16
        $region15: #{_layernorm_call.1} parent=11 // pred_region
          _
        $region16: #{_layernorm_call.1} parent=11 // pred_fallthru
          _
        // Predicated region
        $region17: #{_layernorm_call.1} parent=11 // pred_check
          %p127 = pneg %p83
        $region18: #{_layernorm_call.1} parent=11 // pred_check_branch
          %129 = sbr.rel (%p127) target = $region20
        $region19: #{_layernorm_call.1} parent=11 // pred_region
          _
        $region20: #{_layernorm_call.1} parent=11 // pred_fallthru
          _
      $region12: #{_layernorm_call.1} parent=5 // pred_fallthru
        _
      %p130 = scmp.lt.s32.totalorder %s15, 2
      // Predicated region
      $region21: #{_layernorm_call.1} parent=5 // pred_check
        %p131 = pneg %p130
      $region22: #{_layernorm_call.1} parent=5 // pred_check_branch
        %133 = sbr.rel (%p131) target = $region24
      $region23: #{_layernorm_call.1} parent=5 // pred_region
        // Predicated region
        $region25: #{_layernorm_call.1} parent=23 // pred_check
          %p134 = pneg %p35
        $region26: #{_layernorm_call.1} parent=23 // pred_check_branch
          %136 = sbr.rel (%p134) target = $region28
        $region27: #{_layernorm_call.1} parent=23 // pred_region
          %s137 = sand.u32 %s25, 1
          %s138 = scalar_lea.sflag [#allocation3], %s137
          %s139 = sand.u32 %s25, 1
          %s140 = smul.addr %s139, 8
          %s141 = scalar_lea.vmem [#allocation2], %s140
          %143 = vsyncadd %s138, 0
          %s144 = smul.addr %s15, 8
          %s145 = scalar_lea.hbm %s0, %s144
          %s147 = sshll.u32 %s145, 4
          %s148 = int_to_ptr.hbm [resolvable:$true] %s147
          %s149 = sshll.u32 %s141, 4
          %s150 = int_to_ptr.vmem [resolvable:$true] %s149
          %152 = dma.hbm_to_vmem [thread:$0]  %s148, 128, %s150, %s138
        $region28: #{_layernorm_call.1} parent=23 // pred_fallthru
          _
      $region24: #{_layernorm_call.1} parent=5 // pred_fallthru
        _
      %p153 = scmp.le.s32.totalorder 1, %s15
      %p154 = scmp.lt.s32.totalorder %s15, 3
      %p155 = pnand %p153, %p154
      %p156 = pneg %p155
      // Predicated region
      $region29: #{_layernorm_call.1} parent=5 // pred_check
        _
      $region30: #{_layernorm_call.1} parent=5 // pred_check_branch
        %158 = sbr.rel (%p155) target = $region32
      $region31: #{_layernorm_call.1} parent=5 // pred_region
        %s159 = ssub.s32 %s15, 1
        %s160 = sand.u32 %s28, 1
        %s161 = scalar_lea.sflag [#allocation3], %s160
        %s162 = sand.u32 %s28, 1
        %s163 = smul.addr %s162, 8
        %s164 = scalar_lea.vmem [#allocation2], %s163
        // Predicated region
        $region33: #{_layernorm_call.1} parent=31 // pred_check
          %p165 = pneg %p41
        $region34: #{_layernorm_call.1} parent=31 // pred_check_branch
          %167 = sbr.rel (%p165) target = $region36
        $region35: #{_layernorm_call.1} parent=31 // pred_region
          %169 = dma.done %s161, 128
        $region36: #{_layernorm_call.1} parent=31 // pred_fallthru
          _
        %s170 = sand.u32 %s28, 1
        %s171 = scalar_lea.sflag [#allocation3], %s170
        %s172 = sand.u32 %s28, 1
        %s173 = smul.addr %s172, 8
        %s174 = scalar_lea.vmem [#allocation2], %s173
        %p175 = pneg %p41
        %p176 = pneg %p38
        %p177 = pneg %p62
        %p178 = pneg %p59
        %p179 = pneg %p83
        %p180 = pneg %p80
        %p181 = pneg %p109
        %p182 = pneg %p106
        %s183 = sand.u32 %s96, 1
        %s184 = scalar_lea.sflag [#allocation4], %s183
        %s185 = sand.u32 %s96, 1
        %s186 = smul.addr %s185, 8
        %s187 = scalar_lea.vmem [#allocation5], %s186
        %v188 = vld [vmem:[%s164] sm:$0xff]
        %vm189 = vcmask 261120
        %v190 = vsel %vm189, %v188, 0.0
        %191 = vadd.xlane.f32.xlu0 %v190
        %v192 = vpop.xlane.xlu0 %191
        %v193 = vrcp.pop 32.0
        %v194 = vmul.f32 32.0, %v193
        %v195 = vsub.f32 1.0, %v194
        %v196 = vmul.f32 %v193, %v195
        %v197 = vadd.f32 %v193, %v196
        %vm198 = vweird.f32 %v193
        %v199 = vsel %vm198, %v193, %v197
        %v200 = vmul.f32 %v192, %v199
        %v201 = vsub.f32 %v188, %v200
        %v202 = vmul.f32 %v201, %v201
        %v203 = vsel %vm189, %v202, 0.0
        %204 = vadd.xlane.f32.xlu0 %v203
        %v205 = vpop.xlane.xlu0 %204
        %v206 = vmul.f32 %v205, %v199
        %v207 = vadd.f32 %v206, 1e-05
        %v208 = vrsqrt.pop %v207
        %v209 = vmul.f32 %v208, %v207
        %v210 = vmul.f32 %v209, %v208
        %v211 = vmul.f32 0.5, %v210
        %v212 = vsub.f32 1.5, %v211
        %v213 = vmul.f32 %v208, %v212
        %vm214 = vweird.f32 %v207
        %vm215 = vweird.f32 %v208
        %vm216 = vmor %vm214, %vm215
        %v217 = vsel %vm216, %v208, %v213
        %v218 = vmul.f32 %v201, %v217
        %v219 = vld [vmem:[%s1] sm:$0x1]
        %v221 = vperm.slane %v219, 0
        %v223 = vmul.f32 %v221, %v218
        %v224 = vld [vmem:[%s2] sm:$0x1]
        %v226 = vperm.slane %v224, 0
        %v228 = vadd.f32 %v223, %v226
        %229 = vst.msk [vmem:[%s187] sm:$0xff] %vm189, %v228
        %s230 = sand.u32 %s96, 1
        %s231 = scalar_lea.sflag [#allocation4], %s230
        %s232 = sand.u32 %s96, 1
        %s233 = smul.addr %s232, 8
        %s234 = scalar_lea.vmem [#allocation5], %s233
        // Predicated region
        $region37: #{_layernorm_call.1} parent=31 // pred_check
          %p235 = pneg %p106
        $region38: #{_layernorm_call.1} parent=31 // pred_check_branch
          %237 = sbr.rel (%p235) target = $region40
        $region39: #{_layernorm_call.1} parent=31 // pred_region
          %239 = vsyncadd %s231, 0
          %s240 = smul.addr %s20, 8
          %s241 = scalar_lea.hbm %s3, %s240
          %s243 = sshll.u32 %s234, 4
          %s244 = int_to_ptr.vmem [resolvable:$true] %s243
          %s245 = sshll.u32 %s241, 4
          %s246 = int_to_ptr.hbm [resolvable:$true] %s245
          %248 = dma.vmem_to_hbm [thread:$0]  %s244, 128, %s246, %s231
        $region40: #{_layernorm_call.1} parent=31 // pred_fallthru
          _
      $region32: #{_layernorm_call.1} parent=5 // pred_fallthru
        _
      %p249 = scmp.le.s32.totalorder 2, %s15
      // Predicated region
      $region41: #{_layernorm_call.1} parent=5 // pred_check
        %p250 = pneg %p249
      $region42: #{_layernorm_call.1} parent=5 // pred_check_branch
        %252 = sbr.rel (%p250) target = $region44
      $region43: #{_layernorm_call.1} parent=5 // pred_region
        %s253 = ssub.s32 %s15, 2
        // Predicated region
        $region45: #{_layernorm_call.1} parent=43 // pred_check
          %p254 = pneg %p112
        $region46: #{_layernorm_call.1} parent=43 // pred_check_branch
          %256 = sbr.rel (%p254) target = $region48
        $region47: #{_layernorm_call.1} parent=43 // pred_region
          %s257 = sand.u32 %s97, 1
          %s258 = scalar_lea.sflag [#allocation4], %s257
          %s259 = sand.u32 %s97, 1
          %s260 = smul.addr %s259, 8
          %s261 = scalar_lea.vmem [#allocation5], %s260
          %263 = dma.done %s258, 128
        $region48: #{_layernorm_call.1} parent=43 // pred_fallthru
          _
      $region44: #{_layernorm_call.1} parent=5 // pred_fallthru
        _
    $region6: #{_layernorm_call.1} parent=1 // loop_footer
      %s19 = sadd.s32 1, %s15
    $region7: #{_layernorm_call.1} parent=1 // loop_footer_branch
      %14 = sbr.rel target = $region3
    $region8: #{_layernorm_call.1} parent=1 // loop_exit
      _
    %264 = vsyncpa [#allocation3], 1
    %s265 = scalar_lea.sflag [#allocation3], 1
    %266 = vsyncpa %s265, 1
    %267 = vsyncpa [#allocation4], 1
    %s268 = scalar_lea.sflag [#allocation4], 1
    %269 = vsyncpa %s268, 1

</llo_original>
